<compile_context>
chip_gen: v7x
topology: tpu7x:2x2x1
jax: 0.10.0
libtpu: 0.0.40
codegen_flags: <defaults>
</compile_context>

<pallas_src>
import functools

import jax
import jax.numpy as jnp
from jax import lax
from jax.experimental import pallas as pl
from jax.experimental.pallas import tpu as pltpu


def _mi1x1_kernel(x_ref, w1_ref, bn_scale_ref, bn_shift_ref, w2_ref, b2_ref,
                  wsc_ref, ln_gamma_ref, ln_beta_ref, o_ref, *, eps):
    """One (batch, spatial-tile) step of the fused MI1x1ConvNet forward."""
    x = x_ref[0]  # (C_in, Lt)

    # ---- block_nonlinear -------------------------------------------------
    # Conv1d(C_in -> U, k=1, bias=False): MXU matmul over the channel axis.
    h = jnp.dot(w1_ref[...], x, preferred_element_type=jnp.float32)  # (U, Lt)
    # BatchNorm1d (eval mode, folded to per-channel affine) + ReLU.
    h = jnp.maximum(h * bn_scale_ref[...] + bn_shift_ref[...], 0.0)
    # Conv1d(U -> U, k=1, bias=True).
    h = jnp.dot(w2_ref[...], h, preferred_element_type=jnp.float32)
    h = h + b2_ref[...]

    # ---- linear_shortcut ---------------------------------------------------
    s = jnp.dot(wsc_ref[...], x, preferred_element_type=jnp.float32)  # (U, Lt)

    y = h + s  # (U, Lt)

    # ---- block_ln: Permute(0,2,1) -> LayerNorm(U) -> Permute(0,2,1) --------
    # Equivalent to normalizing over the channel axis per spatial position;
    # the permutes become free axis bookkeeping (no data movement to HBM).
    mu = jnp.mean(y, axis=0, keepdims=True)                 # (1, Lt)
    var = jnp.mean((y - mu) * (y - mu), axis=0, keepdims=True)
    y = (y - mu) * lax.rsqrt(var + eps)
    y = y * ln_gamma_ref[...] + ln_beta_ref[...]

    o_ref[0] = y.astype(o_ref.dtype)


def mi1x1_convnet_forward(x, params, *, eps=1e-5, l_tile=None):
    """Fused MI1x1ConvNet forward. x: (N, C_in, L) -> (N, U, L)."""
    n, c_in, length = x.shape
    w1 = params["w1"]          # (U, C_in)
    w2 = params["w2"]          # (U, U)
    b2 = params["b2"]          # (U,)
    wsc = params["wsc"]        # (U, C_in)
    n_units = w1.shape[0]

    # Fold eval-mode BatchNorm into a per-channel scale/shift.
    bn_scale = params["bn_gamma"] * lax.rsqrt(params["bn_var"] + eps)
    bn_shift = params["bn_beta"] - params["bn_mean"] * bn_scale

    # Per-channel vectors as (U, 1) so they broadcast against (U, L_tile).
    col = lambda v: v.reshape(n_units, 1).astype(jnp.float32)
    bn_scale_c = col(bn_scale)
    bn_shift_c = col(bn_shift)
    b2_c = col(b2)
    ln_g_c = col(params["ln_gamma"])
    ln_b_c = col(params["ln_beta"])

    # Spatial tile: largest lane-aligned tile dividing L; otherwise take the
    # full (small) extent, which is exempt from the (8,128) divisibility rule.
    if l_tile is None:
        l_tile = length
        for cand in (512, 256, 128):
            if length % cand == 0:
                l_tile = cand
                break
    assert length % l_tile == 0

    grid = (n, length // l_tile)

    x_spec = pl.BlockSpec((1, c_in, l_tile), lambda b, l: (b, 0, l))
    out_spec = pl.BlockSpec((1, n_units, l_tile), lambda b, l: (b, 0, l))
    full2d = lambda shape: pl.BlockSpec(shape, lambda b, l: (0, 0))

    in_specs = [
        x_spec,
        full2d((n_units, c_in)),      # w1
        full2d((n_units, 1)),         # bn_scale
        full2d((n_units, 1)),         # bn_shift
        full2d((n_units, n_units)),   # w2
        full2d((n_units, 1)),         # b2
        full2d((n_units, c_in)),      # wsc
        full2d((n_units, 1)),         # ln_gamma
        full2d((n_units, 1)),         # ln_beta
    ]

    # Advisory cost estimate: this op is matmul-light and mem-bound at small C.
    flops = n * length * (4 * n_units * c_in + 2 * n_units * n_units
                          + 10 * n_units)
    bytes_accessed = (x.size + n * n_units * length) * 4 \
        + (w1.size + w2.size + wsc.size + 5 * n_units) * 4
    cost = pl.CostEstimate(flops=flops, transcendentals=n * length,
                           bytes_accessed=bytes_accessed)

    kernel = functools.partial(_mi1x1_kernel, eps=eps)

    return pl.pallas_call(
        kernel,
        out_shape=jax.ShapeDtypeStruct((n, n_units, length), jnp.float32),
        grid_spec=pltpu.PrefetchScalarGridSpec(
            num_scalar_prefetch=0,
            grid=grid,
            in_specs=in_specs,
            out_specs=out_spec,
        ),
        compiler_params=pltpu.CompilerParams(
            dimension_semantics=("parallel", "parallel"),
        ),
        cost_estimate=cost,
    )(x.astype(jnp.float32), w1.astype(jnp.float32), bn_scale_c, bn_shift_c,
      w2.astype(jnp.float32), b2_c, wsc.astype(jnp.float32), ln_g_c, ln_b_c)


def mi1x1_convnet_reference(x, params, eps=1e-5):
    """Plain-JAX reference mirroring the PyTorch forward (BN in eval mode)."""
    w1, w2, b2, wsc = params["w1"], params["w2"], params["b2"], params["wsc"]
    bn_g, bn_b = params["bn_gamma"], params["bn_beta"]
    bn_m, bn_v = params["bn_mean"], params["bn_var"]
    ln_g, ln_b = params["ln_gamma"], params["ln_beta"]

    h = jnp.einsum("uc,ncl->nul", w1, x)
    h = (h - bn_m[None, :, None]) / jnp.sqrt(bn_v[None, :, None] + eps)
    h = h * bn_g[None, :, None] + bn_b[None, :, None]
    h = jnp.maximum(h, 0.0)
    h = jnp.einsum("vu,nul->nvl", w2, h) + b2[None, :, None]
    s = jnp.einsum("uc,ncl->nul", wsc, x)
    y = h + s

    yt = jnp.transpose(y, (0, 2, 1))                      # Permute(0, 2, 1)
    mu = yt.mean(-1, keepdims=True)
    var = ((yt - mu) ** 2).mean(-1, keepdims=True)
    yt = (yt - mu) / jnp.sqrt(var + eps) * ln_g + ln_b    # LayerNorm(U)
    return jnp.transpose(yt, (0, 2, 1))                   # Permute(0, 2, 1)


def make_params(key, n_input, n_units):
    ks = jax.random.split(key, 8)
    w1 = jax.random.normal(ks[0], (n_units, n_input), jnp.float32) * 0.2
    w2 = jax.random.normal(ks[1], (n_units, n_units), jnp.float32) * 0.1
    b2 = jax.random.normal(ks[2], (n_units,), jnp.float32) * 0.1
    # linear_shortcut init: small uniform, then identity on the first n_input
    # channels when n_units >= n_input (matches the PyTorch eye-mask init).
    wsc = jax.random.uniform(ks[3], (n_units, n_input), jnp.float32,
                             minval=-0.01, maxval=0.01)
    if n_units >= n_input:
        eye = jnp.eye(n_units, n_input, dtype=jnp.float32)
        wsc = jnp.where(eye > 0, 1.0, wsc)
    params = {
        "w1": w1, "w2": w2, "b2": b2, "wsc": wsc,
        "bn_gamma": 1.0 + 0.1 * jax.random.normal(ks[4], (n_units,), jnp.float32),
        "bn_beta": 0.1 * jax.random.normal(ks[5], (n_units,), jnp.float32),
        "bn_mean": 0.05 * jax.random.normal(ks[6], (n_units,), jnp.float32),
        "bn_var": jnp.abs(1.0 + 0.1 * jax.random.normal(ks[7], (n_units,),
                                                        jnp.float32)),
        "ln_gamma": 1.0 + 0.05 * jax.random.normal(ks[4], (n_units,), jnp.float32),
        "ln_beta": 0.05 * jax.random.normal(ks[5], (n_units,), jnp.float32),
    }
    return params


if __name__ == "__main__":
    key = jax.random.PRNGKey(0)
    k_x, k_p = jax.random.split(key)

    # MI1x1ConvNet operates on Conv1d-style inputs: (batch, channels, length).
    n_input, n_units = 4, 32
    batch, length = 2, 256          # length tiles as 2 x 128 lane-dense blocks

    x = jax.random.normal(k_x, (batch, n_input, length), dtype=jnp.float32)
    params = make_params(k_p, n_input, n_units)

    y = mi1x1_convnet_forward(x, params)
    y = jax.block_until_ready(y)

    y_ref = mi1x1_convnet_reference(x, params)
    assert y.shape == y_ref.shape == (batch, n_units, length), y.shape
    assert y.dtype == jnp.float32
    assert jnp.allclose(y, y_ref, atol=1e-4, rtol=1e-4), (
        "Pallas MI1x1ConvNet mismatch vs reference; max abs err = "
        f"{float(jnp.max(jnp.abs(y - y_ref)))}")

    print("KERNEL_OK")
</pallas_src>

<mosaic_0001>
module attributes {stable_mosaic.version = 11 : i64} {
  func.func @_mi1x1_kernel(%arg0: i32, %arg1: i32, %arg2: memref<1x4x256xf32, #tpu.memory_space<vmem>>, %arg3: memref<32x4xf32, #tpu.memory_space<vmem>>, %arg4: memref<32x1xf32, #tpu.memory_space<vmem>>, %arg5: memref<32x1xf32, #tpu.memory_space<vmem>>, %arg6: memref<32x32xf32, #tpu.memory_space<vmem>>, %arg7: memref<32x1xf32, #tpu.memory_space<vmem>>, %arg8: memref<32x4xf32, #tpu.memory_space<vmem>>, %arg9: memref<32x1xf32, #tpu.memory_space<vmem>>, %arg10: memref<32x1xf32, #tpu.memory_space<vmem>>, %arg11: memref<1x32x256xf32, #tpu.memory_space<vmem>>) attributes {dimension_semantics = [#tpu.dimension_semantics<parallel>, #tpu.dimension_semantics<parallel>], iteration_bounds = array<i64: 2, 1>, scalar_prefetch = 0 : i64, scratch_operands = 0 : i64, tpu.core_type = #tpu.core_type<tc>, window_params = [{transform_indices = @transform_0, window_bounds = array<i64: 1, 4, 256>}, {pipeline_mode = #tpu.pipeline_mode<synchronous>, transform_indices = @transform_1, window_bounds = array<i64: 32, 4>}, {pipeline_mode = #tpu.pipeline_mode<synchronous>, transform_indices = @transform_2, window_bounds = array<i64: 32, 1>}, {pipeline_mode = #tpu.pipeline_mode<synchronous>, transform_indices = @transform_3, window_bounds = array<i64: 32, 1>}, {pipeline_mode = #tpu.pipeline_mode<synchronous>, transform_indices = @transform_4, window_bounds = array<i64: 32, 32>}, {pipeline_mode = #tpu.pipeline_mode<synchronous>, transform_indices = @transform_5, window_bounds = array<i64: 32, 1>}, {pipeline_mode = #tpu.pipeline_mode<synchronous>, transform_indices = @transform_6, window_bounds = array<i64: 32, 4>}, {pipeline_mode = #tpu.pipeline_mode<synchronous>, transform_indices = @transform_7, window_bounds = array<i64: 32, 1>}, {pipeline_mode = #tpu.pipeline_mode<synchronous>, transform_indices = @transform_8, window_bounds = array<i64: 32, 1>}, {transform_indices = @transform_9, window_bounds = array<i64: 1, 32, 256>}]} {
    %c0 = arith.constant 0 : index
    %c0_0 = arith.constant 0 : index
    %c0_1 = arith.constant 0 : index
    %0 = vector.load %arg2[%c0, %c0_0, %c0_1] : memref<1x4x256xf32, #tpu.memory_space<vmem>>, vector<1x4x256xf32>
    %1 = vector.shape_cast %0 : vector<1x4x256xf32> to vector<4x256xf32>
    %c0_2 = arith.constant 0 : index
    %c0_3 = arith.constant 0 : index
    %2 = vector.load %arg3[%c0_2, %c0_3] : memref<32x4xf32, #tpu.memory_space<vmem>>, vector<32x4xf32>
    %cst = arith.constant dense<0.000000e+00> : vector<32x256xf32>
    %3 = tpu.matmul %2, %1, %cst {dimension_numbers = #tpu.dot_dimension_numbers<[1], [0], [0], [1], [0, 0, 1, 1], [], []>} : vector<32x4xf32>, vector<4x256xf32>, vector<32x256xf32> -> vector<32x256xf32>
    %c0_4 = arith.constant 0 : index
    %c0_5 = arith.constant 0 : index
    %4 = vector.load %arg4[%c0_4, %c0_5] : memref<32x1xf32, #tpu.memory_space<vmem>>, vector<32x1xf32>
    %5 = vector.broadcast %4 : vector<32x1xf32> to vector<32x256xf32>
    %6 = arith.mulf %3, %5 : vector<32x256xf32>
    %c0_6 = arith.constant 0 : index
    %c0_7 = arith.constant 0 : index
    %7 = vector.load %arg5[%c0_6, %c0_7] : memref<32x1xf32, #tpu.memory_space<vmem>>, vector<32x1xf32>
    %8 = vector.broadcast %7 : vector<32x1xf32> to vector<32x256xf32>
    %9 = arith.addf %6, %8 : vector<32x256xf32>
    %cst_8 = arith.constant 0.000000e+00 : f32
    %10 = vector.broadcast %cst_8 : f32 to vector<32x256xf32>
    %11 = arith.maximumf %9, %10 : vector<32x256xf32>
    %c0_9 = arith.constant 0 : index
    %c0_10 = arith.constant 0 : index
    %12 = vector.load %arg6[%c0_9, %c0_10] : memref<32x32xf32, #tpu.memory_space<vmem>>, vector<32x32xf32>
    %cst_11 = arith.constant dense<0.000000e+00> : vector<32x256xf32>
    %13 = tpu.matmul %12, %11, %cst_11 {dimension_numbers = #tpu.dot_dimension_numbers<[1], [0], [0], [1], [0, 0, 1, 1], [], []>} : vector<32x32xf32>, vector<32x256xf32>, vector<32x256xf32> -> vector<32x256xf32>
    %c0_12 = arith.constant 0 : index
    %c0_13 = arith.constant 0 : index
    %14 = vector.load %arg7[%c0_12, %c0_13] : memref<32x1xf32, #tpu.memory_space<vmem>>, vector<32x1xf32>
    %15 = vector.broadcast %14 : vector<32x1xf32> to vector<32x256xf32>
    %16 = arith.addf %13, %15 : vector<32x256xf32>
    %c0_14 = arith.constant 0 : index
    %c0_15 = arith.constant 0 : index
    %17 = vector.load %arg8[%c0_14, %c0_15] : memref<32x4xf32, #tpu.memory_space<vmem>>, vector<32x4xf32>
    %cst_16 = arith.constant dense<0.000000e+00> : vector<32x256xf32>
    %18 = tpu.matmul %17, %1, %cst_16 {dimension_numbers = #tpu.dot_dimension_numbers<[1], [0], [0], [1], [0, 0, 1, 1], [], []>} : vector<32x4xf32>, vector<4x256xf32>, vector<32x256xf32> -> vector<32x256xf32>
    %19 = arith.addf %16, %18 : vector<32x256xf32>
    %cst_17 = arith.constant dense<0.000000e+00> : vector<256xf32>
    %20 = vector.multi_reduction <add>, %19, %cst_17 [0] : vector<32x256xf32> to vector<256xf32>
    %21 = vector.shape_cast %20 : vector<256xf32> to vector<1x256xf32>
    %cst_18 = arith.constant 3.200000e+01 : f32
    %22 = vector.broadcast %cst_18 : f32 to vector<1x256xf32>
    %23 = arith.divf %21, %22 : vector<1x256xf32>
    %24 = vector.broadcast %23 : vector<1x256xf32> to vector<32x256xf32>
    %25 = arith.subf %19, %24 : vector<32x256xf32>
    %26 = vector.broadcast %23 : vector<1x256xf32> to vector<32x256xf32>
    %27 = arith.subf %19, %26 : vector<32x256xf32>
    %28 = arith.mulf %25, %27 : vector<32x256xf32>
    %cst_19 = arith.constant dense<0.000000e+00> : vector<256xf32>
    %29 = vector.multi_reduction <add>, %28, %cst_19 [0] : vector<32x256xf32> to vector<256xf32>
    %30 = vector.shape_cast %29 : vector<256xf32> to vector<1x256xf32>
    %cst_20 = arith.constant 3.200000e+01 : f32
    %31 = vector.broadcast %cst_20 : f32 to vector<1x256xf32>
    %32 = arith.divf %30, %31 : vector<1x256xf32>
    %33 = vector.broadcast %23 : vector<1x256xf32> to vector<32x256xf32>
    %34 = arith.subf %19, %33 : vector<32x256xf32>
    %cst_21 = arith.constant 9.99999974E-6 : f32
    %35 = vector.broadcast %cst_21 : f32 to vector<1x256xf32>
    %36 = arith.addf %32, %35 : vector<1x256xf32>
    %37 = math.rsqrt %36 : vector<1x256xf32>
    %38 = vector.broadcast %37 : vector<1x256xf32> to vector<32x256xf32>
    %39 = arith.mulf %34, %38 : vector<32x256xf32>
    %c0_22 = arith.constant 0 : index
    %c0_23 = arith.constant 0 : index
    %40 = vector.load %arg9[%c0_22, %c0_23] : memref<32x1xf32, #tpu.memory_space<vmem>>, vector<32x1xf32>
    %41 = vector.broadcast %40 : vector<32x1xf32> to vector<32x256xf32>
    %42 = arith.mulf %39, %41 : vector<32x256xf32>
    %c0_24 = arith.constant 0 : index
    %c0_25 = arith.constant 0 : index
    %43 = vector.load %arg10[%c0_24, %c0_25] : memref<32x1xf32, #tpu.memory_space<vmem>>, vector<32x1xf32>
    %44 = vector.broadcast %43 : vector<32x1xf32> to vector<32x256xf32>
    %45 = arith.addf %42, %44 : vector<32x256xf32>
    %c0_26 = arith.constant 0 : index
    %c0_27 = arith.constant 0 : index
    %c0_28 = arith.constant 0 : index
    %46 = vector.load %arg11[%c0_26, %c0_27, %c0_28] : memref<1x32x256xf32, #tpu.memory_space<vmem>>, vector<1x32x256xf32>
    %47 = vector.shape_cast %46 : vector<1x32x256xf32> to vector<32x256xf32>
    %48 = vector.shape_cast %45 : vector<32x256xf32> to vector<1x32x256xf32>
    tpu.vector_store %arg11[%c0_26, %c0_27, %c0_28], %48 {strides = array<i32>} : memref<1x32x256xf32, #tpu.memory_space<vmem>>, vector<1x32x256xf32>,
    return
  }
  func.func @transform_0(%arg0: i32, %arg1: i32) -> (i32, i32, i32) {
    %c0_i32 = arith.constant 0 : i32
    %c0_i32_0 = arith.constant 0 : i32
    return %arg0, %c0_i32, %arg1 : i32, i32, i32
  }
  func.func @transform_1(%arg0: i32, %arg1: i32) -> (i32, i32) {
    %c0_i32 = arith.constant 0 : i32
    %c0_i32_0 = arith.constant 0 : i32
    %c0_i32_1 = arith.constant 0 : i32
    return %c0_i32, %c0_i32_0 : i32, i32
  }
  func.func @transform_2(%arg0: i32, %arg1: i32) -> (i32, i32) {
    %c0_i32 = arith.constant 0 : i32
    %c0_i32_0 = arith.constant 0 : i32
    %c0_i32_1 = arith.constant 0 : i32
    return %c0_i32, %c0_i32_0 : i32, i32
  }
  func.func @transform_3(%arg0: i32, %arg1: i32) -> (i32, i32) {
    %c0_i32 = arith.constant 0 : i32
    %c0_i32_0 = arith.constant 0 : i32
    %c0_i32_1 = arith.constant 0 : i32
    return %c0_i32, %c0_i32_0 : i32, i32
  }
  func.func @transform_4(%arg0: i32, %arg1: i32) -> (i32, i32) {
    %c0_i32 = arith.constant 0 : i32
    %c0_i32_0 = arith.constant 0 : i32
    %c0_i32_1 = arith.constant 0 : i32
    return %c0_i32, %c0_i32_0 : i32, i32
  }
  func.func @transform_5(%arg0: i32, %arg1: i32) -> (i32, i32) {
    %c0_i32 = arith.constant 0 : i32
    %c0_i32_0 = arith.constant 0 : i32
    %c0_i32_1 = arith.constant 0 : i32
    return %c0_i32, %c0_i32_0 : i32, i32
  }
  func.func @transform_6(%arg0: i32, %arg1: i32) -> (i32, i32) {
    %c0_i32 = arith.constant 0 : i32
    %c0_i32_0 = arith.constant 0 : i32
    %c0_i32_1 = arith.constant 0 : i32
    return %c0_i32, %c0_i32_0 : i32, i32
  }
  func.func @transform_7(%arg0: i32, %arg1: i32) -> (i32, i32) {
    %c0_i32 = arith.constant 0 : i32
    %c0_i32_0 = arith.constant 0 : i32
    %c0_i32_1 = arith.constant 0 : i32
    return %c0_i32, %c0_i32_0 : i32, i32
  }
  func.func @transform_8(%arg0: i32, %arg1: i32) -> (i32, i32) {
    %c0_i32 = arith.constant 0 : i32
    %c0_i32_0 = arith.constant 0 : i32
    %c0_i32_1 = arith.constant 0 : i32
    return %c0_i32, %c0_i32_0 : i32, i32
  }
  func.func @transform_9(%arg0: i32, %arg1: i32) -> (i32, i32, i32) {
    %c0_i32 = arith.constant 0 : i32
    %c0_i32_0 = arith.constant 0 : i32
    return %arg0, %c0_i32, %arg1 : i32, i32, i32
  }
}

</mosaic_0001>

<llo_original>
// kernel: tpu_custom_call.1
$region0: #{tpu_custom_call.1}
  #allocation0 [shape = 'u32[]', space=smem, size = 0x4, offset = 0x4, fixed_abs, tag = 'smem constant byte address 0x4 - core index']
  #allocation1 [shape = 'u32[144,128]{1,0:T(1,128)}', space=vmem, size = 0x12000, scoped, tag = 'internal scratch']
  %s0 = inlined_call_operand.vmem [shape: f32[2,4,256], index: 0, kind: input, shape index: {}]
  %s1 = inlined_call_operand.vmem [shape: f32[32,4], index: 1, kind: input, shape index: {}]
  %s2 = inlined_call_operand.vmem [shape: f32[32,1], index: 2, kind: input, shape index: {}]
  %s3 = inlined_call_operand.vmem [shape: f32[32,1], index: 3, kind: input, shape index: {}]
  %s4 = inlined_call_operand.vmem [shape: f32[32,32], index: 4, kind: input, shape index: {}]
  %s5 = inlined_call_operand.vmem [shape: f32[32,1], index: 5, kind: input, shape index: {}]
  %s6 = inlined_call_operand.vmem [shape: f32[32,4], index: 6, kind: input, shape index: {}]
  %s7 = inlined_call_operand.vmem [shape: f32[32,1], index: 7, kind: input, shape index: {}]
  %s8 = inlined_call_operand.vmem [shape: f32[32,1], index: 8, kind: input, shape index: {}]
  %s9 = inlined_call_operand.hbm [shape: f32[2,32,256], index: 9, kind: output, shape index: {}]
  %s10 = sld [smem:[#allocation0]]
  $region69: #{tpu_custom_call.1} parent=0
    _
  %s12 = ssub.s32 1, %s10
  %s13 = scalar_select 0, %s12, %s10
  $region1: #{tpu_custom_call.1} parent=0
    #allocation2 [shape = 'u8[65536]{0}', space=vmem, size = 0x10000, scoped, tag = 'output window, operand 0']
    #allocation3 [shape = 's32[2]{0}', space=sflag, size = 0x8, scoped, tag = 'scoped memory for tpu_custom_call.1']
    %14 = vsyncpa [#allocation3], 0
    %s15 = scalar_lea.sflag [#allocation3], 1
    %16 = vsyncpa %s15, 0
    loop: start=0, step=1, limit=4
    $region2: #{tpu_custom_call.1} parent=1 // loop_pre_header
      _
    $region3: #{tpu_custom_call.1} parent=1 // loop_header
      %s18 = sphi 0, %s22
      %p19 = scmp.ge.s32.totalorder %s18, 4
      %s25 = sphi 0, %s37
      %s26 = sphi 0, %s33
      %s27 = sphi 0, %s25
      %s28 = sphi 0, %s26
      %s29 = sphi 0, %s27
      %s30 = sphi 0, %s28
      %s42 = sphi 0, %s44
      %s45 = sphi 0, %s42
      %s46 = sphi 0, %s45
      %s62 = sphi 0, %s46
      %s66 = sphi 0, %s66
      %s68 = sphi 0, %s66
      %s69 = sphi 0, %s68
      %s83 = sphi 0, %s69
      %s87 = sphi 0, %s87
      %s89 = sphi 0, %s87
      %s90 = sphi 0, %s89
      %s104 = sphi 0, %s90
      %s108 = sphi 0, %s108
      %s110 = sphi 0, %s108
      %s111 = sphi 0, %s110
      %s125 = sphi 0, %s111
      %s129 = sphi 0, %s129
      %s131 = sphi 0, %s129
      %s132 = sphi 0, %s131
      %s146 = sphi 0, %s132
      %s150 = sphi 0, %s150
      %s152 = sphi 0, %s150
      %s153 = sphi 0, %s152
      %s167 = sphi 0, %s153
      %s171 = sphi 0, %s171
      %s173 = sphi 0, %s171
      %s174 = sphi 0, %s173
      %s188 = sphi 0, %s174
      %s192 = sphi 0, %s192
      %s194 = sphi 0, %s192
      %s195 = sphi 0, %s194
      %s209 = sphi 0, %s195
      %s213 = sphi 0, %s213
      %s215 = sphi 0, %s213
      %s216 = sphi 0, %s215
      %s230 = sphi 0, %s216
      %s238 = sphi 0, %s240
      %s241 = sphi 0, %s238
      %s242 = sphi 0, %s241
      %s258 = sphi 0, %s242
    $region4: #{tpu_custom_call.1} parent=1 // loop_header_branch
      %21 = sbr.rel (%p19) target = $region8
    $region5: #{tpu_custom_call.1} parent=1 // loop_body
      %s23 = ssub.s32 %s18, 1
      %s24 = ssub.s32 %s18, 2
      %s31 = sadd.s32 1, %s26
      %p32 = scmp.ge.s32.totalorder %s31, 1
      %s33 = scalar_select %p32, 0, %s31
      %s34 = sadd.s32 1, %s25
      %s35 = scalar_select %p32, %s34, %s25
      %p36 = scmp.ge.s32.totalorder %s35, 2
      %s37 = scalar_select %p36, 0, %s35
      %s38 = ssub.s32 %s25, %s37
      %s39 = ssub.s32 %s26, %s33
      %s40 = sor.u32 %s38, %s39
      %p41 = scmp.eq.s32.totalorder %s40, 0
      %s43 = sadd.s32 %s42, 1
      %s44 = scalar_select %p41, %s42, %s43
      %p47 = pneg %p41
      %p48 = scmp.eq.s32.totalorder %s18, 1
      %p49 = por %p47, %p48
      %p50 = scmp.ne.s32.totalorder %s42, %s45
      %p51 = scmp.eq.s32.totalorder %s18, 0
      %p52 = por %p50, %p51
      %p53 = scmp.ne.s32.totalorder %s42, %s45
      %p54 = scmp.eq.s32.totalorder %s23, 1
      %p55 = por %p53, %p54
      %p56 = scmp.ne.s32.totalorder %s45, %s46
      %p57 = scmp.eq.s32.totalorder %s23, 0
      %p58 = por %p56, %p57
      %p59 = scmp.ne.s32.totalorder %s45, %s46
      %p60 = scmp.eq.s32.totalorder %s24, 1
      %p61 = por %p59, %p60
      %p63 = scmp.ne.s32.totalorder %s46, %s62
      %p64 = scmp.eq.s32.totalorder %s24, 0
      %p65 = por %p63, %p64
      %s67 = sadd.s32 %s66, 1
      %p70 = scmp.eq.s32.totalorder %s18, 1
      %p71 = scmp.ne.s32.totalorder %s66, %s68
      %p72 = scmp.eq.s32.totalorder %s18, 0
      %p73 = por %p71, %p72
      %p74 = scmp.ne.s32.totalorder %s66, %s68
      %p75 = scmp.eq.s32.totalorder %s23, 1
      %p76 = por %p74, %p75
      %p77 = scmp.ne.s32.totalorder %s68, %s69
      %p78 = scmp.eq.s32.totalorder %s23, 0
      %p79 = por %p77, %p78
      %p80 = scmp.ne.s32.totalorder %s68, %s69
      %p81 = scmp.eq.s32.totalorder %s24, 1
      %p82 = por %p80, %p81
      %p84 = scmp.ne.s32.totalorder %s69, %s83
      %p85 = scmp.eq.s32.totalorder %s24, 0
      %p86 = por %p84, %p85
      %s88 = sadd.s32 %s87, 1
      %p91 = scmp.eq.s32.totalorder %s18, 1
      %p92 = scmp.ne.s32.totalorder %s87, %s89
      %p93 = scmp.eq.s32.totalorder %s18, 0
      %p94 = por %p92, %p93
      %p95 = scmp.ne.s32.totalorder %s87, %s89
      %p96 = scmp.eq.s32.totalorder %s23, 1
      %p97 = por %p95, %p96
      %p98 = scmp.ne.s32.totalorder %s89, %s90
      %p99 = scmp.eq.s32.totalorder %s23, 0
      %p100 = por %p98, %p99
      %p101 = scmp.ne.s32.totalorder %s89, %s90
      %p102 = scmp.eq.s32.totalorder %s24, 1
      %p103 = por %p101, %p102
      %p105 = scmp.ne.s32.totalorder %s90, %s104
      %p106 = scmp.eq.s32.totalorder %s24, 0
      %p107 = por %p105, %p106
      %s109 = sadd.s32 %s108, 1
      %p112 = scmp.eq.s32.totalorder %s18, 1
      %p113 = scmp.ne.s32.totalorder %s108, %s110
      %p114 = scmp.eq.s32.totalorder %s18, 0
      %p115 = por %p113, %p114
      %p116 = scmp.ne.s32.totalorder %s108, %s110
      %p117 = scmp.eq.s32.totalorder %s23, 1
      %p118 = por %p116, %p117
      %p119 = scmp.ne.s32.totalorder %s110, %s111
      %p120 = scmp.eq.s32.totalorder %s23, 0
      %p121 = por %p119, %p120
      %p122 = scmp.ne.s32.totalorder %s110, %s111
      %p123 = scmp.eq.s32.totalorder %s24, 1
      %p124 = por %p122, %p123
      %p126 = scmp.ne.s32.totalorder %s111, %s125
      %p127 = scmp.eq.s32.totalorder %s24, 0
      %p128 = por %p126, %p127
      %s130 = sadd.s32 %s129, 1
      %p133 = scmp.eq.s32.totalorder %s18, 1
      %p134 = scmp.ne.s32.totalorder %s129, %s131
      %p135 = scmp.eq.s32.totalorder %s18, 0
      %p136 = por %p134, %p135
      %p137 = scmp.ne.s32.totalorder %s129, %s131
      %p138 = scmp.eq.s32.totalorder %s23, 1
      %p139 = por %p137, %p138
      %p140 = scmp.ne.s32.totalorder %s131, %s132
      %p141 = scmp.eq.s32.totalorder %s23, 0
      %p142 = por %p140, %p141
      %p143 = scmp.ne.s32.totalorder %s131, %s132
      %p144 = scmp.eq.s32.totalorder %s24, 1
      %p145 = por %p143, %p144
      %p147 = scmp.ne.s32.totalorder %s132, %s146
      %p148 = scmp.eq.s32.totalorder %s24, 0
      %p149 = por %p147, %p148
      %s151 = sadd.s32 %s150, 1
      %p154 = scmp.eq.s32.totalorder %s18, 1
      %p155 = scmp.ne.s32.totalorder %s150, %s152
      %p156 = scmp.eq.s32.totalorder %s18, 0
      %p157 = por %p155, %p156
      %p158 = scmp.ne.s32.totalorder %s150, %s152
      %p159 = scmp.eq.s32.totalorder %s23, 1
      %p160 = por %p158, %p159
      %p161 = scmp.ne.s32.totalorder %s152, %s153
      %p162 = scmp.eq.s32.totalorder %s23, 0
      %p163 = por %p161, %p162
      %p164 = scmp.ne.s32.totalorder %s152, %s153
      %p165 = scmp.eq.s32.totalorder %s24, 1
      %p166 = por %p164, %p165
      %p168 = scmp.ne.s32.totalorder %s153, %s167
      %p169 = scmp.eq.s32.totalorder %s24, 0
      %p170 = por %p168, %p169
      %s172 = sadd.s32 %s171, 1
      %p175 = scmp.eq.s32.totalorder %s18, 1
      %p176 = scmp.ne.s32.totalorder %s171, %s173
      %p177 = scmp.eq.s32.totalorder %s18, 0
      %p178 = por %p176, %p177
      %p179 = scmp.ne.s32.totalorder %s171, %s173
      %p180 = scmp.eq.s32.totalorder %s23, 1
      %p181 = por %p179, %p180
      %p182 = scmp.ne.s32.totalorder %s173, %s174
      %p183 = scmp.eq.s32.totalorder %s23, 0
      %p184 = por %p182, %p183
      %p185 = scmp.ne.s32.totalorder %s173, %s174
      %p186 = scmp.eq.s32.totalorder %s24, 1
      %p187 = por %p185, %p186
      %p189 = scmp.ne.s32.totalorder %s174, %s188
      %p190 = scmp.eq.s32.totalorder %s24, 0
      %p191 = por %p189, %p190
      %s193 = sadd.s32 %s192, 1
      %p196 = scmp.eq.s32.totalorder %s18, 1
      %p197 = scmp.ne.s32.totalorder %s192, %s194
      %p198 = scmp.eq.s32.totalorder %s18, 0
      %p199 = por %p197, %p198
      %p200 = scmp.ne.s32.totalorder %s192, %s194
      %p201 = scmp.eq.s32.totalorder %s23, 1
      %p202 = por %p200, %p201
      %p203 = scmp.ne.s32.totalorder %s194, %s195
      %p204 = scmp.eq.s32.totalorder %s23, 0
      %p205 = por %p203, %p204
      %p206 = scmp.ne.s32.totalorder %s194, %s195
      %p207 = scmp.eq.s32.totalorder %s24, 1
      %p208 = por %p206, %p207
      %p210 = scmp.ne.s32.totalorder %s195, %s209
      %p211 = scmp.eq.s32.totalorder %s24, 0
      %p212 = por %p210, %p211
      %s214 = sadd.s32 %s213, 1
      %p217 = scmp.eq.s32.totalorder %s18, 1
      %p218 = scmp.ne.s32.totalorder %s213, %s215
      %p219 = scmp.eq.s32.totalorder %s18, 0
      %p220 = por %p218, %p219
      %p221 = scmp.ne.s32.totalorder %s213, %s215
      %p222 = scmp.eq.s32.totalorder %s23, 1
      %p223 = por %p221, %p222
      %p224 = scmp.ne.s32.totalorder %s215, %s216
      %p225 = scmp.eq.s32.totalorder %s23, 0
      %p226 = por %p224, %p225
      %p227 = scmp.ne.s32.totalorder %s215, %s216
      %p228 = scmp.eq.s32.totalorder %s24, 1
      %p229 = por %p227, %p228
      %p231 = scmp.ne.s32.totalorder %s216, %s230
      %p232 = scmp.eq.s32.totalorder %s24, 0
      %p233 = por %p231, %p232
      %s234 = ssub.s32 %s25, %s37
      %s235 = ssub.s32 %s26, %s33
      %s236 = sor.u32 %s234, %s235
      %p237 = scmp.eq.s32.totalorder %s236, 0
      %s239 = sadd.s32 %s238, 1
      %s240 = scalar_select %p237, %s238, %s239
      %p243 = pneg %p237
      %p244 = scmp.eq.s32.totalorder %s18, 1
      %p245 = por %p243, %p244
      %p246 = scmp.ne.s32.totalorder %s238, %s241
      %p247 = scmp.eq.s32.totalorder %s18, 0
      %p248 = por %p246, %p247
      %p249 = scmp.ne.s32.totalorder %s238, %s241
      %p250 = scmp.eq.s32.totalorder %s23, 1
      %p251 = por %p249, %p250
      %p252 = scmp.ne.s32.totalorder %s241, %s242
      %p253 = scmp.eq.s32.totalorder %s23, 0
      %p254 = por %p252, %p253
      %p255 = scmp.ne.s32.totalorder %s241, %s242
      %p256 = scmp.eq.s32.totalorder %s24, 1
      %p257 = por %p255, %p256
      %p259 = scmp.ne.s32.totalorder %s242, %s258
      %p260 = scmp.eq.s32.totalorder %s24, 0
      %p261 = por %p259, %p260
      %p262 = scmp.le.s32.totalorder 1, %s18
      %p263 = scmp.lt.s32.totalorder %s18, 3
      %p264 = pnand %p262, %p263
      %p265 = pneg %p264
      // Predicated region
      $region9: #{tpu_custom_call.1} parent=5 // pred_check
        _
      $region10: #{tpu_custom_call.1} parent=5 // pred_check_branch
        %267 = sbr.rel (%p264) target = $region12
      $region11: #{tpu_custom_call.1} parent=5 // pred_region
        %s268 = ssub.s32 %s18, 1
        // Predicated region
        $region13: #{tpu_custom_call.1} parent=11 // pred_check
          %p269 = pneg %p79
        $region14: #{tpu_custom_call.1} parent=11 // pred_check_branch
          %271 = sbr.rel (%p269) target = $region16
        $region15: #{tpu_custom_call.1} parent=11 // pred_region
          _
        $region16: #{tpu_custom_call.1} parent=11 // pred_fallthru
          _
        // Predicated region
        $region17: #{tpu_custom_call.1} parent=11 // pred_check
          %p272 = pneg %p100
        $region18: #{tpu_custom_call.1} parent=11 // pred_check_branch
          %274 = sbr.rel (%p272) target = $region20
        $region19: #{tpu_custom_call.1} parent=11 // pred_region
          _
        $region20: #{tpu_custom_call.1} parent=11 // pred_fallthru
          _
        // Predicated region
        $region21: #{tpu_custom_call.1} parent=11 // pred_check
          %p275 = pneg %p121
        $region22: #{tpu_custom_call.1} parent=11 // pred_check_branch
          %277 = sbr.rel (%p275) target = $region24
        $region23: #{tpu_custom_call.1} parent=11 // pred_region
          _
        $region24: #{tpu_custom_call.1} parent=11 // pred_fallthru
          _
        // Predicated region
        $region25: #{tpu_custom_call.1} parent=11 // pred_check
          %p278 = pneg %p142
        $region26: #{tpu_custom_call.1} parent=11 // pred_check_branch
          %280 = sbr.rel (%p278) target = $region28
        $region27: #{tpu_custom_call.1} parent=11 // pred_region
          _
        $region28: #{tpu_custom_call.1} parent=11 // pred_fallthru
          _
        // Predicated region
        $region29: #{tpu_custom_call.1} parent=11 // pred_check
          %p281 = pneg %p163
        $region30: #{tpu_custom_call.1} parent=11 // pred_check_branch
          %283 = sbr.rel (%p281) target = $region32
        $region31: #{tpu_custom_call.1} parent=11 // pred_region
          _
        $region32: #{tpu_custom_call.1} parent=11 // pred_fallthru
          _
        // Predicated region
        $region33: #{tpu_custom_call.1} parent=11 // pred_check
          %p284 = pneg %p184
        $region34: #{tpu_custom_call.1} parent=11 // pred_check_branch
          %286 = sbr.rel (%p284) target = $region36
        $region35: #{tpu_custom_call.1} parent=11 // pred_region
          _
        $region36: #{tpu_custom_call.1} parent=11 // pred_fallthru
          _
        // Predicated region
        $region37: #{tpu_custom_call.1} parent=11 // pred_check
          %p287 = pneg %p205
        $region38: #{tpu_custom_call.1} parent=11 // pred_check_branch
          %289 = sbr.rel (%p287) target = $region40
        $region39: #{tpu_custom_call.1} parent=11 // pred_region
          _
        $region40: #{tpu_custom_call.1} parent=11 // pred_fallthru
          _
        // Predicated region
        $region41: #{tpu_custom_call.1} parent=11 // pred_check
          %p290 = pneg %p226
        $region42: #{tpu_custom_call.1} parent=11 // pred_check_branch
          %292 = sbr.rel (%p290) target = $region44
        $region43: #{tpu_custom_call.1} parent=11 // pred_region
          _
        $region44: #{tpu_custom_call.1} parent=11 // pred_fallthru
          _
      $region12: #{tpu_custom_call.1} parent=5 // pred_fallthru
        _
      %p293 = scmp.lt.s32.totalorder %s18, 2
      // Predicated region
      $region45: #{tpu_custom_call.1} parent=5 // pred_check
        %p294 = pneg %p293
      $region46: #{tpu_custom_call.1} parent=5 // pred_check_branch
        %296 = sbr.rel (%p294) target = $region48
      $region47: #{tpu_custom_call.1} parent=5 // pred_region
        // Predicated region
        $region49: #{tpu_custom_call.1} parent=47 // pred_check
          %p297 = pneg %p52
        $region50: #{tpu_custom_call.1} parent=47 // pred_check_branch
          %299 = sbr.rel (%p297) target = $region52
        $region51: #{tpu_custom_call.1} parent=47 // pred_region
          %s300 = smul.u32 2, %s26
          %p301 = scmp.lt.s32.totalorder %s25, 1
          %s302 = scalar_select %p301, %s25, 1
          %p303 = scmp.lt.s32.totalorder %s300, 1
          %s304 = scalar_select %p303, %s300, 1
          %s305 = smul.addr %s302, 2
          %s306 = sadd.s32 %s304, %s305
          %s307 = smul.addr %s306, 4
          %s308 = scalar_lea.vmem %s0, %s307
          %s309 = smul.u32 2, %s26
        $region52: #{tpu_custom_call.1} parent=47 // pred_fallthru
          _
      $region48: #{tpu_custom_call.1} parent=5 // pred_fallthru
        _
      %p310 = scmp.le.s32.totalorder 1, %s18
      %p311 = scmp.lt.s32.totalorder %s18, 3
      %p312 = pnand %p310, %p311
      %p313 = pneg %p312
      // Predicated region
      $region53: #{tpu_custom_call.1} parent=5 // pred_check
        _
      $region54: #{tpu_custom_call.1} parent=5 // pred_check_branch
        %315 = sbr.rel (%p312) target = $region56
      $region55: #{tpu_custom_call.1} parent=5 // pred_region
        %s316 = ssub.s32 %s18, 1
        %s317 = smul.u32 2, %s28
        %p318 = scmp.lt.s32.totalorder %s27, 1
        %s319 = scalar_select %p318, %s27, 1
        %p320 = scmp.lt.s32.totalorder %s317, 1
        %s321 = scalar_select %p320, %s317, 1
        %s322 = smul.addr %s319, 2
        %s323 = sadd.s32 %s321, %s322
        %s324 = smul.addr %s323, 4
        %s325 = scalar_lea.vmem %s0, %s324
        %p326 = pneg %p58
        %p327 = pneg %p55
        %p328 = pneg %p79
        %p329 = pneg %p76
        %p330 = pneg %p100
        %p331 = pneg %p97
        %p332 = pneg %p121
        %p333 = pneg %p118
        %p334 = pneg %p142
        %p335 = pneg %p139
        %p336 = pneg %p163
        %p337 = pneg %p160
        %p338 = pneg %p184
        %p339 = pneg %p181
        %p340 = pneg %p205
        %p341 = pneg %p202
        %p342 = pneg %p226
        %p343 = pneg %p223
        %p344 = pneg %p254
        %p345 = pneg %p251
        %s346 = sand.u32 %s241, 1
        %s347 = scalar_lea.sflag [#allocation3], %s346
        %s348 = sand.u32 %s241, 1
        %s349 = smul.addr %s348, 64
        %s350 = scalar_lea.vmem [#allocation2], %s349
        %s351 = smul.u32 2, %s28
        %p352 = scmp.lt.s32.totalorder %s27, 1
        %s353 = scalar_select %p352, %s27, 1
        %p354 = scmp.lt.s32.totalorder %s351, 1
        %s355 = scalar_select %p354, %s351, 1
        %s356 = smul.addr %s353, 2
        %s357 = sadd.s32 %s355, %s356
        %s358 = smul.addr %s357, 4
        %s359 = scalar_lea.vmem %s0, %s358
        %s360 = smul.u32 2, %s28
        %s361 = smul.u32 2, %s28
        %v362 = vld [vmem:[%s359] sm:$0xff]
        %v363 = vld [vmem:[%s1] sm:$0xff]
        %v364 = vld [vmem:[%s1 + $0x8] sm:$0xff]
        %v365 = vld [vmem:[%s1 + $0x10] sm:$0xff]
        %v366 = vld [vmem:[%s1 + $0x18] sm:$0xff]
        %v368 = vcombine.high %v362, %v362
        %vm369 = vcmask 31744
        %v371 = vsel %vm369, %v363, 0
        %v374 = vsel %vm369, %v364, 0
        %v377 = vsel %vm369, %v365, 0
        %v380 = vsel %vm369, %v366, 0
        %vm382 = vcmask 1043456
        %v383 = vsel %vm382, %v362, 0
        %v385 = vsel %vm382, %v368, 0
        %387 = vmatprep.subr.mxu0 %v385
        %388 = vmatpush1.msra.mxu0 %v383
        %389 = vmatprep.subr.mxu0 0.0
        %390 = vmatpush1.msra.mxu0 0.0
        %391 = vmatprep.subr.mxu0 0.0
        %392 = vmatpush1.msra.mxu0 0.0
        %393 = vmatprep.subr.mxu0 0.0
        %394 = vmatpush1.msra.mxu0 0.0
        %395 = vmatprep.subr.mxu0 0.0
        %396 = vmatpush1.msra.mxu0 0.0
        %397 = vmatprep.subr.mxu0 0.0
        %398 = vmatpush1.msra.mxu0 0.0
        %399 = vmatprep.subr.mxu0 0.0
        %400 = vmatpush1.msra.mxu0 0.0
        %401 = vmatprep.subr.mxu0 0.0
        %402 = vmatpush1.msra.mxu0 0.0
        %403 = vmatprep.subr.mxu0 0.0
        %404 = vmatpush1.msra.mxu0 0.0
        %405 = vmatprep.subr.mxu0 0.0
        %406 = vmatpush1.msra.mxu0 0.0
        %407 = vmatprep.subr.mxu0 0.0
        %408 = vmatpush1.msra.mxu0 0.0
        %409 = vmatprep.subr.mxu0 0.0
        %410 = vmatpush1.msra.mxu0 0.0
        %411 = vmatprep.subr.mxu0 0.0
        %412 = vmatpush1.msra.mxu0 0.0
        %413 = vmatprep.subr.mxu0 0.0
        %414 = vmatpush1.msra.mxu0 0.0
        %415 = vmatprep.subr.mxu0 0.0
        %416 = vmatpush1.msra.mxu0 0.0
        %417 = vmatprep.subr.mxu0 0.0
        %418 = vmatpush1.msra.mxu0 0.0
        %419 = vmatprep.subr.mxu0 0.0
        %420 = vmatpush1.msra.mxu0 0.0
        %421 = vmatprep.subr.mxu0 0.0
        %422 = vmatpush1.msra.mxu0 0.0
        %423 = vmatprep.subr.mxu0 0.0
        %424 = vmatpush1.msra.mxu0 0.0
        %425 = vmatprep.subr.mxu0 0.0
        %426 = vmatpush1.msra.mxu0 0.0
        %427 = vmatprep.subr.mxu0 0.0
        %428 = vmatpush1.msra.mxu0 0.0
        %429 = vmatprep.subr.mxu0 0.0
        %430 = vmatpush1.msra.mxu0 0.0
        %431 = vmatprep.subr.mxu0 0.0
        %432 = vmatpush1.msra.mxu0 0.0
        %433 = vmatprep.subr.mxu0 0.0
        %434 = vmatpush1.msra.mxu0 0.0
        %435 = vmatprep.subr.mxu0 0.0
        %436 = vmatpush1.msra.mxu0 0.0
        %437 = vmatprep.subr.mxu0 0.0
        %438 = vmatpush1.msra.mxu0 0.0
        %439 = vmatprep.subr.mxu0 0.0
        %440 = vmatpush1.msra.mxu0 0.0
        %441 = vmatprep.subr.mxu0 0.0
        %442 = vmatpush1.msra.mxu0 0.0
        %443 = vmatprep.subr.mxu0 0.0
        %444 = vmatpush1.msra.mxu0 0.0
        %445 = vmatprep.subr.mxu0 0.0
        %446 = vmatpush1.msra.mxu0 0.0
        %447 = vmatprep.subr.mxu0 0.0
        %448 = vmatpush1.msra.mxu0 0.0
        %449 = vmatprep.subr.mxu0 0.0
        %450 = vmatpush1.msra.mxu0 0.0
        %451 = vmatprep.mubr.f32.mxu0 0.0
        %452 = vmatmul.mubr.f32.gmra.mrb[0].mxu0 %v371
        %v453 = vpop.f32.mrb[0].mxu0
        %v454 = vadd.f32 0.0, %v453
        %v455 = vpop.f32.mrb[0].mxu0
        %v456 = vadd.f32 0.0, %v455
        %457 = vmatprep.mubr.f32.mxu0 0.0
        %458 = vmatmul.mubr.f32.gmra.mrb[0].mxu0 %v374
        %v459 = vpop.f32.mrb[0].mxu0
        %v460 = vadd.f32 0.0, %v459
        %v461 = vpop.f32.mrb[0].mxu0
        %v462 = vadd.f32 0.0, %v461
        %463 = vmatprep.mubr.f32.mxu0 0.0
        %464 = vmatmul.mubr.f32.gmra.mrb[0].mxu0 %v377
        %v465 = vpop.f32.mrb[0].mxu0
        %v466 = vadd.f32 0.0, %v465
        %v467 = vpop.f32.mrb[0].mxu0
        %v468 = vadd.f32 0.0, %v467
        %469 = vmatprep.mubr.f32.mxu0 0.0
        %470 = vmatmul.mubr.f32.gmra.mrb[0].mxu0 %v380
        %v471 = vpop.f32.mrb[0].mxu0
        %v472 = vadd.f32 0.0, %v471
        %v473 = vpop.f32.mrb[0].mxu0
        %v474 = vadd.f32 0.0, %v473
        %475 = vdwg.mxu0
        %v476 = vld [vmem:[%s2] sm:$0xff]
        %v477 = vld [vmem:[%s2 + $0x8] sm:$0xff]
        %v478 = vld [vmem:[%s2 + $0x10] sm:$0xff]
        %v479 = vld [vmem:[%s2 + $0x18] sm:$0xff]
        %481 = vset.pattern.permute.xlu0 0
        %482 = vperm.xlu0 %481, %v476
        %v483 = vpop.permute.xlu0 %482
        %486 = vset.pattern.permute.xlu0 0
        %487 = vperm.xlu0 %486, %v477
        %v488 = vpop.permute.xlu0 %487
        %491 = vset.pattern.permute.xlu0 0
        %492 = vperm.xlu0 %491, %v478
        %v493 = vpop.permute.xlu0 %492
        %496 = vset.pattern.permute.xlu0 0
        %497 = vperm.xlu0 %496, %v479
        %v498 = vpop.permute.xlu0 %497
        %v500 = vmul.f32 %v454, %v483
        %v501 = vmul.f32 %v456, %v483
        %v502 = vmul.f32 %v460, %v488
        %v503 = vmul.f32 %v462, %v488
        %v504 = vmul.f32 %v466, %v493
        %v505 = vmul.f32 %v468, %v493
        %v506 = vmul.f32 %v472, %v498
        %v507 = vmul.f32 %v474, %v498
        %v508 = vld [vmem:[%s3] sm:$0xff]
        %v509 = vld [vmem:[%s3 + $0x8] sm:$0xff]
        %v510 = vld [vmem:[%s3 + $0x10] sm:$0xff]
        %v511 = vld [vmem:[%s3 + $0x18] sm:$0xff]
        %513 = vset.pattern.permute.xlu0 0
        %514 = vperm.xlu0 %513, %v508
        %v515 = vpop.permute.xlu0 %514
        %518 = vset.pattern.permute.xlu0 0
        %519 = vperm.xlu0 %518, %v509
        %v520 = vpop.permute.xlu0 %519
        %523 = vset.pattern.permute.xlu0 0
        %524 = vperm.xlu0 %523, %v510
        %v525 = vpop.permute.xlu0 %524
        %528 = vset.pattern.permute.xlu0 0
        %529 = vperm.xlu0 %528, %v511
        %v530 = vpop.permute.xlu0 %529
        %v532 = vadd.f32 %v500, %v515
        %v533 = vadd.f32 %v501, %v515
        %v534 = vadd.f32 %v502, %v520
        %v535 = vadd.f32 %v503, %v520
        %v536 = vadd.f32 %v504, %v525
        %v537 = vadd.f32 %v505, %v525
        %v538 = vadd.f32 %v506, %v530
        %v539 = vadd.f32 %v507, %v530
        %v540 = vmax.f32 %v532, 0.0
        %v541 = vmax.f32 %v533, 0.0
        %v542 = vmax.f32 %v534, 0.0
        %v543 = vmax.f32 %v535, 0.0
        %v544 = vmax.f32 %v536, 0.0
        %v545 = vmax.f32 %v537, 0.0
        %v546 = vmax.f32 %v538, 0.0
        %v547 = vmax.f32 %v539, 0.0
        %v548 = vld [vmem:[%s4] sm:$0xff]
        %v549 = vld [vmem:[%s4 + $0x8] sm:$0xff]
        %v550 = vld [vmem:[%s4 + $0x10] sm:$0xff]
        %v551 = vld [vmem:[%s4 + $0x18] sm:$0xff]
        %v552 = vld [vmem:[%s5] sm:$0xff]
        %v553 = vld [vmem:[%s5 + $0x8] sm:$0xff]
        %v554 = vld [vmem:[%s5 + $0x10] sm:$0xff]
        %v555 = vld [vmem:[%s5 + $0x18] sm:$0xff]
        %557 = vset.pattern.permute.xlu0 0
        %558 = vperm.xlu0 %557, %v552
        %v559 = vpop.permute.xlu0 %558
        %562 = vset.pattern.permute.xlu0 0
        %563 = vperm.xlu0 %562, %v553
        %v564 = vpop.permute.xlu0 %563
        %567 = vset.pattern.permute.xlu0 0
        %568 = vperm.xlu0 %567, %v554
        %v569 = vpop.permute.xlu0 %568
        %572 = vset.pattern.permute.xlu0 0
        %573 = vperm.xlu0 %572, %v555
        %v574 = vpop.permute.xlu0 %573
        %vm576 = vcmask 261120
        %v578 = vsel %vm576, %v548, 0
        %v581 = vsel %vm576, %v549, 0
        %v584 = vsel %vm576, %v550, 0
        %v587 = vsel %vm576, %v551, 0
        %589 = vmatprep.subr.mxu0 %v541
        %590 = vmatpush1.msra.mxu0 %v540
        %591 = vmatprep.subr.mxu0 %v543
        %592 = vmatpush1.msra.mxu0 %v542
        %593 = vmatprep.subr.mxu0 %v545
        %594 = vmatpush1.msra.mxu0 %v544
        %595 = vmatprep.subr.mxu0 %v547
        %596 = vmatpush1.msra.mxu0 %v546
        %597 = vmatprep.subr.mxu0 0.0
        %598 = vmatpush1.msra.mxu0 0.0
        %599 = vmatprep.subr.mxu0 0.0
        %600 = vmatpush1.msra.mxu0 0.0
        %601 = vmatprep.subr.mxu0 0.0
        %602 = vmatpush1.msra.mxu0 0.0
        %603 = vmatprep.subr.mxu0 0.0
        %604 = vmatpush1.msra.mxu0 0.0
        %605 = vmatprep.subr.mxu0 0.0
        %606 = vmatpush1.msra.mxu0 0.0
        %607 = vmatprep.subr.mxu0 0.0
        %608 = vmatpush1.msra.mxu0 0.0
        %609 = vmatprep.subr.mxu0 0.0
        %610 = vmatpush1.msra.mxu0 0.0
        %611 = vmatprep.subr.mxu0 0.0
        %612 = vmatpush1.msra.mxu0 0.0
        %613 = vmatprep.subr.mxu0 0.0
        %614 = vmatpush1.msra.mxu0 0.0
        %615 = vmatprep.subr.mxu0 0.0
        %616 = vmatpush1.msra.mxu0 0.0
        %617 = vmatprep.subr.mxu0 0.0
        %618 = vmatpush1.msra.mxu0 0.0
        %619 = vmatprep.subr.mxu0 0.0
        %620 = vmatpush1.msra.mxu0 0.0
        %621 = vmatprep.subr.mxu0 0.0
        %622 = vmatpush1.msra.mxu0 0.0
        %623 = vmatprep.subr.mxu0 0.0
        %624 = vmatpush1.msra.mxu0 0.0
        %625 = vmatprep.subr.mxu0 0.0
        %626 = vmatpush1.msra.mxu0 0.0
        %627 = vmatprep.subr.mxu0 0.0
        %628 = vmatpush1.msra.mxu0 0.0
        %629 = vmatprep.subr.mxu0 0.0
        %630 = vmatpush1.msra.mxu0 0.0
        %631 = vmatprep.subr.mxu0 0.0
        %632 = vmatpush1.msra.mxu0 0.0
        %633 = vmatprep.subr.mxu0 0.0
        %634 = vmatpush1.msra.mxu0 0.0
        %635 = vmatprep.subr.mxu0 0.0
        %636 = vmatpush1.msra.mxu0 0.0
        %637 = vmatprep.subr.mxu0 0.0
        %638 = vmatpush1.msra.mxu0 0.0
        %639 = vmatprep.subr.mxu0 0.0
        %640 = vmatpush1.msra.mxu0 0.0
        %641 = vmatprep.subr.mxu0 0.0
        %642 = vmatpush1.msra.mxu0 0.0
        %643 = vmatprep.subr.mxu0 0.0
        %644 = vmatpush1.msra.mxu0 0.0
        %645 = vmatprep.subr.mxu0 0.0
        %646 = vmatpush1.msra.mxu0 0.0
        %647 = vmatprep.subr.mxu0 0.0
        %648 = vmatpush1.msra.mxu0 0.0
        %649 = vmatprep.subr.mxu0 0.0
        %650 = vmatpush1.msra.mxu0 0.0
        %651 = vmatprep.subr.mxu0 0.0
        %652 = vmatpush1.msra.mxu0 0.0
        %653 = vmatprep.mubr.f32.mxu0 0.0
        %654 = vmatmul.mubr.f32.gmra.mrb[0].mxu0 %v578
        %v655 = vpop.f32.mrb[0].mxu0
        %v656 = vadd.f32 %v559, %v655
        %v657 = vpop.f32.mrb[0].mxu0
        %v658 = vadd.f32 %v559, %v657
        %659 = vmatprep.mubr.f32.mxu0 0.0
        %660 = vmatmul.mubr.f32.gmra.mrb[0].mxu0 %v581
        %v661 = vpop.f32.mrb[0].mxu0
        %v662 = vadd.f32 %v564, %v661
        %v663 = vpop.f32.mrb[0].mxu0
        %v664 = vadd.f32 %v564, %v663
        %665 = vmatprep.mubr.f32.mxu0 0.0
        %666 = vmatmul.mubr.f32.gmra.mrb[0].mxu0 %v584
        %v667 = vpop.f32.mrb[0].mxu0
        %v668 = vadd.f32 %v569, %v667
        %v669 = vpop.f32.mrb[0].mxu0
        %v670 = vadd.f32 %v569, %v669
        %671 = vmatprep.mubr.f32.mxu0 0.0
        %672 = vmatmul.mubr.f32.gmra.mrb[0].mxu0 %v587
        %v673 = vpop.f32.mrb[0].mxu0
        %v674 = vadd.f32 %v574, %v673
        %v675 = vpop.f32.mrb[0].mxu0
        %v676 = vadd.f32 %v574, %v675
        %677 = vdwg.mxu0
        %v678 = vld [vmem:[%s6] sm:$0xff]
        %v679 = vld [vmem:[%s6 + $0x8] sm:$0xff]
        %v680 = vld [vmem:[%s6 + $0x10] sm:$0xff]
        %v681 = vld [vmem:[%s6 + $0x18] sm:$0xff]
        %v683 = vsel %vm369, %v678, 0
        %v686 = vsel %vm369, %v679, 0
        %v689 = vsel %vm369, %v680, 0
        %v692 = vsel %vm369, %v681, 0
        %694 = vmatprep.subr.mxu0 %v385
        %695 = vmatpush1.msra.mxu0 %v383
        %696 = vmatprep.subr.mxu0 0.0
        %697 = vmatpush1.msra.mxu0 0.0
        %698 = vmatprep.subr.mxu0 0.0
        %699 = vmatpush1.msra.mxu0 0.0
        %700 = vmatprep.subr.mxu0 0.0
        %701 = vmatpush1.msra.mxu0 0.0
        %702 = vmatprep.subr.mxu0 0.0
        %703 = vmatpush1.msra.mxu0 0.0
        %704 = vmatprep.subr.mxu0 0.0
        %705 = vmatpush1.msra.mxu0 0.0
        %706 = vmatprep.subr.mxu0 0.0
        %707 = vmatpush1.msra.mxu0 0.0
        %708 = vmatprep.subr.mxu0 0.0
        %709 = vmatpush1.msra.mxu0 0.0
        %710 = vmatprep.subr.mxu0 0.0
        %711 = vmatpush1.msra.mxu0 0.0
        %712 = vmatprep.subr.mxu0 0.0
        %713 = vmatpush1.msra.mxu0 0.0
        %714 = vmatprep.subr.mxu0 0.0
        %715 = vmatpush1.msra.mxu0 0.0
        %716 = vmatprep.subr.mxu0 0.0
        %717 = vmatpush1.msra.mxu0 0.0
        %718 = vmatprep.subr.mxu0 0.0
        %719 = vmatpush1.msra.mxu0 0.0
        %720 = vmatprep.subr.mxu0 0.0
        %721 = vmatpush1.msra.mxu0 0.0
        %722 = vmatprep.subr.mxu0 0.0
        %723 = vmatpush1.msra.mxu0 0.0
        %724 = vmatprep.subr.mxu0 0.0
        %725 = vmatpush1.msra.mxu0 0.0
        %726 = vmatprep.subr.mxu0 0.0
        %727 = vmatpush1.msra.mxu0 0.0
        %728 = vmatprep.subr.mxu0 0.0
        %729 = vmatpush1.msra.mxu0 0.0
        %730 = vmatprep.subr.mxu0 0.0
        %731 = vmatpush1.msra.mxu0 0.0
        %732 = vmatprep.subr.mxu0 0.0
        %733 = vmatpush1.msra.mxu0 0.0
        %734 = vmatprep.subr.mxu0 0.0
        %735 = vmatpush1.msra.mxu0 0.0
        %736 = vmatprep.subr.mxu0 0.0
        %737 = vmatpush1.msra.mxu0 0.0
        %738 = vmatprep.subr.mxu0 0.0
        %739 = vmatpush1.msra.mxu0 0.0
        %740 = vmatprep.subr.mxu0 0.0
        %741 = vmatpush1.msra.mxu0 0.0
        %742 = vmatprep.subr.mxu0 0.0
        %743 = vmatpush1.msra.mxu0 0.0
        %744 = vmatprep.subr.mxu0 0.0
        %745 = vmatpush1.msra.mxu0 0.0
        %746 = vmatprep.subr.mxu0 0.0
        %747 = vmatpush1.msra.mxu0 0.0
        %748 = vmatprep.subr.mxu0 0.0
        %749 = vmatpush1.msra.mxu0 0.0
        %750 = vmatprep.subr.mxu0 0.0
        %751 = vmatpush1.msra.mxu0 0.0
        %752 = vmatprep.subr.mxu0 0.0
        %753 = vmatpush1.msra.mxu0 0.0
        %754 = vmatprep.subr.mxu0 0.0
        %755 = vmatpush1.msra.mxu0 0.0
        %756 = vmatprep.subr.mxu0 0.0
        %757 = vmatpush1.msra.mxu0 0.0
        %758 = vmatprep.mubr.f32.mxu0 0.0
        %759 = vmatmul.mubr.f32.gmra.mrb[0].mxu0 %v683
        %v760 = vpop.f32.mrb[0].mxu0
        %v761 = vadd.f32 0.0, %v760
        %v762 = vpop.f32.mrb[0].mxu0
        %v763 = vadd.f32 0.0, %v762
        %764 = vmatprep.mubr.f32.mxu0 0.0
        %765 = vmatmul.mubr.f32.gmra.mrb[0].mxu0 %v686
        %v766 = vpop.f32.mrb[0].mxu0
        %v767 = vadd.f32 0.0, %v766
        %v768 = vpop.f32.mrb[0].mxu0
        %v769 = vadd.f32 0.0, %v768
        %770 = vmatprep.mubr.f32.mxu0 0.0
        %771 = vmatmul.mubr.f32.gmra.mrb[0].mxu0 %v689
        %v772 = vpop.f32.mrb[0].mxu0
        %v773 = vadd.f32 0.0, %v772
        %v774 = vpop.f32.mrb[0].mxu0
        %v775 = vadd.f32 0.0, %v774
        %776 = vmatprep.mubr.f32.mxu0 0.0
        %777 = vmatmul.mubr.f32.gmra.mrb[0].mxu0 %v692
        %v778 = vpop.f32.mrb[0].mxu0
        %v779 = vadd.f32 0.0, %v778
        %v780 = vpop.f32.mrb[0].mxu0
        %v781 = vadd.f32 0.0, %v780
        %782 = vdwg.mxu0
        %v783 = vadd.f32 %v656, %v761
        %v784 = vadd.f32 %v658, %v763
        %v785 = vadd.f32 %v662, %v767
        %v786 = vadd.f32 %v664, %v769
        %v787 = vadd.f32 %v668, %v773
        %v788 = vadd.f32 %v670, %v775
        %v789 = vadd.f32 %v674, %v779
        %v790 = vadd.f32 %v676, %v781
        %v791 = vadd.f32 %v783, %v785
        %v792 = vadd.f32 %v791, %v787
        %v793 = vadd.f32 %v792, %v789
        %v794 = vrot.slane %v793, 4
        %v795 = vadd.f32 %v793, %v794
        %v796 = vrot.slane %v795, 2
        %v797 = vadd.f32 %v795, %v796
        %v798 = vrot.slane %v797, 1
        %v799 = vadd.f32 %v797, %v798
        %v800 = vadd.f32 %v784, %v786
        %v801 = vadd.f32 %v800, %v788
        %v802 = vadd.f32 %v801, %v790
        %v803 = vrot.slane %v802, 4
        %v804 = vadd.f32 %v802, %v803
        %v805 = vrot.slane %v804, 2
        %v806 = vadd.f32 %v804, %v805
        %v807 = vrot.slane %v806, 1
        %v808 = vadd.f32 %v806, %v807
        %v809 = vrcp.pop 32.0
        %v810 = vmul.f32 %v799, %v809
        %v811 = vmul.f32 %v808, %v809
        %v812 = vsub.f32 %v783, %v810
        %v813 = vsub.f32 %v784, %v811
        %v814 = vsub.f32 %v785, %v810
        %v815 = vsub.f32 %v786, %v811
        %v816 = vsub.f32 %v787, %v810
        %v817 = vsub.f32 %v788, %v811
        %v818 = vsub.f32 %v789, %v810
        %v819 = vsub.f32 %v790, %v811
        %v820 = vmul.f32 %v812, %v812
        %v821 = vmul.f32 %v813, %v813
        %v822 = vmul.f32 %v814, %v814
        %v823 = vmul.f32 %v815, %v815
        %v824 = vmul.f32 %v816, %v816
        %v825 = vmul.f32 %v817, %v817
        %v826 = vmul.f32 %v818, %v818
        %v827 = vmul.f32 %v819, %v819
        %v828 = vadd.f32 %v820, %v822
        %v829 = vadd.f32 %v828, %v824
        %v830 = vadd.f32 %v829, %v826
        %v831 = vrot.slane %v830, 4
        %v832 = vadd.f32 %v830, %v831
        %v833 = vrot.slane %v832, 2
        %v834 = vadd.f32 %v832, %v833
        %v835 = vrot.slane %v834, 1
        %v836 = vadd.f32 %v834, %v835
        %v837 = vadd.f32 %v821, %v823
        %v838 = vadd.f32 %v837, %v825
        %v839 = vadd.f32 %v838, %v827
        %v840 = vrot.slane %v839, 4
        %v841 = vadd.f32 %v839, %v840
        %v842 = vrot.slane %v841, 2
        %v843 = vadd.f32 %v841, %v842
        %v844 = vrot.slane %v843, 1
        %v845 = vadd.f32 %v843, %v844
        %v846 = vmul.f32 %v836, %v809
        %v847 = vmul.f32 %v845, %v809
        %v848 = vadd.f32 %v846, 1e-05
        %v849 = vadd.f32 %v847, 1e-05
        %v850 = vrsqrt.pop %v848
        %v851 = vrsqrt.pop %v849
        %v852 = vmul.f32 %v812, %v850
        %v853 = vmul.f32 %v813, %v851
        %v854 = vmul.f32 %v814, %v850
        %v855 = vmul.f32 %v815, %v851
        %v856 = vmul.f32 %v816, %v850
        %v857 = vmul.f32 %v817, %v851
        %v858 = vmul.f32 %v818, %v850
        %v859 = vmul.f32 %v819, %v851
        %v860 = vld [vmem:[%s7] sm:$0xff]
        %v861 = vld [vmem:[%s7 + $0x8] sm:$0xff]
        %v862 = vld [vmem:[%s7 + $0x10] sm:$0xff]
        %v863 = vld [vmem:[%s7 + $0x18] sm:$0xff]
        %865 = vset.pattern.permute.xlu0 0
        %866 = vperm.xlu0 %865, %v860
        %v867 = vpop.permute.xlu0 %866
        %870 = vset.pattern.permute.xlu0 0
        %871 = vperm.xlu0 %870, %v861
        %v872 = vpop.permute.xlu0 %871
        %875 = vset.pattern.permute.xlu0 0
        %876 = vperm.xlu0 %875, %v862
        %v877 = vpop.permute.xlu0 %876
        %880 = vset.pattern.permute.xlu0 0
        %881 = vperm.xlu0 %880, %v863
        %v882 = vpop.permute.xlu0 %881
        %v884 = vmul.f32 %v852, %v867
        %v885 = vmul.f32 %v853, %v867
        %v886 = vmul.f32 %v854, %v872
        %v887 = vmul.f32 %v855, %v872
        %v888 = vmul.f32 %v856, %v877
        %v889 = vmul.f32 %v857, %v877
        %v890 = vmul.f32 %v858, %v882
        %v891 = vmul.f32 %v859, %v882
        %v892 = vld [vmem:[%s8] sm:$0xff]
        %v893 = vld [vmem:[%s8 + $0x8] sm:$0xff]
        %v894 = vld [vmem:[%s8 + $0x10] sm:$0xff]
        %v895 = vld [vmem:[%s8 + $0x18] sm:$0xff]
        %897 = vset.pattern.permute.xlu0 0
        %898 = vperm.xlu0 %897, %v892
        %v899 = vpop.permute.xlu0 %898
        %902 = vset.pattern.permute.xlu0 0
        %903 = vperm.xlu0 %902, %v893
        %v904 = vpop.permute.xlu0 %903
        %907 = vset.pattern.permute.xlu0 0
        %908 = vperm.xlu0 %907, %v894
        %v909 = vpop.permute.xlu0 %908
        %912 = vset.pattern.permute.xlu0 0
        %913 = vperm.xlu0 %912, %v895
        %v914 = vpop.permute.xlu0 %913
        %v916 = vadd.f32 %v884, %v899
        %v917 = vadd.f32 %v885, %v899
        %v918 = vadd.f32 %v886, %v904
        %v919 = vadd.f32 %v887, %v904
        %v920 = vadd.f32 %v888, %v909
        %v921 = vadd.f32 %v889, %v909
        %v922 = vadd.f32 %v890, %v914
        %v923 = vadd.f32 %v891, %v914
        %924 = vst [vmem:[%s350] sm:$0xff] %v916
        %925 = vst [vmem:[%s350 + $0x8] sm:$0xff] %v917
        %926 = vst [vmem:[%s350 + $0x10] sm:$0xff] %v918
        %927 = vst [vmem:[%s350 + $0x18] sm:$0xff] %v919
        %928 = vst [vmem:[%s350 + $0x20] sm:$0xff] %v920
        %929 = vst [vmem:[%s350 + $0x28] sm:$0xff] %v921
        %930 = vst [vmem:[%s350 + $0x30] sm:$0xff] %v922
        %931 = vst [vmem:[%s350 + $0x38] sm:$0xff] %v923
        %s932 = sand.u32 %s241, 1
        %s933 = scalar_lea.sflag [#allocation3], %s932
        %s934 = sand.u32 %s241, 1
        %s935 = smul.addr %s934, 64
        %s936 = scalar_lea.vmem [#allocation2], %s935
        // Predicated region
        $region57: #{tpu_custom_call.1} parent=55 // pred_check
          %p937 = pneg %p251
        $region58: #{tpu_custom_call.1} parent=55 // pred_check_branch
          %939 = sbr.rel (%p937) target = $region60
        $region59: #{tpu_custom_call.1} parent=55 // pred_region
          %s940 = smul.u32 2, %s28
          %s942 = ssub.s32 1024, 1024
          %943 = vsyncadd %s933, %s942
          %s944 = smul.addr %s27, 8
          %s945 = sadd.s32 %s940, %s944
          %s946 = smul.addr %s945, 128
          %s947 = scalar_lea.hbm %s9, %s946
          %s948 = sshll.u32 %s936, 4
          %s949 = int_to_ptr.vmem [resolvable:$true] %s948
          %954 = dma.vmem_to_hbm [thread:$0]  %s949, 1024, %s947, %s933, 256, 256, 16
        $region60: #{tpu_custom_call.1} parent=55 // pred_fallthru
          _
      $region56: #{tpu_custom_call.1} parent=5 // pred_fallthru
        _
      %p955 = scmp.le.s32.totalorder 2, %s18
      // Predicated region
      $region61: #{tpu_custom_call.1} parent=5 // pred_check
        %p956 = pneg %p955
      $region62: #{tpu_custom_call.1} parent=5 // pred_check_branch
        %958 = sbr.rel (%p956) target = $region64
      $region63: #{tpu_custom_call.1} parent=5 // pred_region
        %s959 = ssub.s32 %s18, 2
        // Predicated region
        $region65: #{tpu_custom_call.1} parent=63 // pred_check
          %p960 = pneg %p257
        $region66: #{tpu_custom_call.1} parent=63 // pred_check_branch
          %962 = sbr.rel (%p960) target = $region68
        $region67: #{tpu_custom_call.1} parent=63 // pred_region
          %s963 = sand.u32 %s242, 1
          %s964 = scalar_lea.sflag [#allocation3], %s963
          %s965 = sand.u32 %s242, 1
          %s966 = smul.addr %s965, 64
          %s967 = scalar_lea.vmem [#allocation2], %s966
          %968 = dma.done %s964, 1024
        $region68: #{tpu_custom_call.1} parent=63 // pred_fallthru
          _
      $region64: #{tpu_custom_call.1} parent=5 // pred_fallthru
        _
    $region6: #{tpu_custom_call.1} parent=1 // loop_footer
      %s22 = sadd.s32 1, %s18
    $region7: #{tpu_custom_call.1} parent=1 // loop_footer_branch
      %17 = sbr.rel target = $region3
    $region8: #{tpu_custom_call.1} parent=1 // loop_exit
      _
    %969 = vsyncpa [#allocation3], 1
    %s970 = scalar_lea.sflag [#allocation3], 1
    %971 = vsyncpa %s970, 1

</llo_original>
